<compile_context>
chip_gen: v6e
topology: v6e:2x2x1
jax: 0.10.0
libtpu: 0.0.40
codegen_flags: <defaults>
</compile_context>

<pallas_src>
import functools

import jax
import jax.numpy as jnp
from jax import lax
from jax.experimental import pallas as pl
from jax.experimental.pallas import tpu as pltpu


# ---------------------------------------------------------------------------
# Kernels — all tiles are channels-first (C, Tn); Tn sits on the lane axis.
# ---------------------------------------------------------------------------

def _matmul_stats_kernel(n_in, *refs):
    """Layer-0 pass: y = sum_i W_i @ x_i ; per-batch per-channel sum / sumsq.

    refs = x_0..x_{n-1} (1,C_i,Tn) f32, w_0..w_{n-1} (Cout,C_i) f32,
           y_out (1,Cout,Tn) bf16, psum (1,Cout,1) f32, pssq (1,Cout,1) f32
    """
    x_refs = refs[:n_in]
    w_refs = refs[n_in:2 * n_in]
    y_ref, psum_ref, pssq_ref = refs[2 * n_in:]

    @pl.when(pl.program_id(1) == 0)
    def _():
        psum_ref[...] = jnp.zeros_like(psum_ref)
        pssq_ref[...] = jnp.zeros_like(pssq_ref)

    y = jnp.dot(w_refs[0][...], x_refs[0][0], preferred_element_type=jnp.float32)
    for i in range(1, n_in):
        y = y + jnp.dot(w_refs[i][...], x_refs[i][0],
                        preferred_element_type=jnp.float32)

    y_ref[0] = y.astype(y_ref.dtype)                 # bf16 store, f32 stats
    psum_ref[0] += jnp.sum(y, axis=1, keepdims=True)
    pssq_ref[0] += jnp.sum(y * y, axis=1, keepdims=True)


def _bn_relu_matmul_stats_kernel(y_ref, scale_ref, shift_ref, w_ref,
                                 yo_ref, psum_ref, pssq_ref):
    """Middle pass: x = relu(y*scale+shift); y_next = W @ x; per-batch stats."""
    @pl.when(pl.program_id(1) == 0)
    def _():
        psum_ref[...] = jnp.zeros_like(psum_ref)
        pssq_ref[...] = jnp.zeros_like(pssq_ref)

    x = jnp.maximum(y_ref[0].astype(jnp.float32) * scale_ref[...]
                    + shift_ref[...], 0.0)           # (Cin, Tn)
    y = jnp.dot(w_ref[...], x, preferred_element_type=jnp.float32)

    yo_ref[0] = y.astype(yo_ref.dtype)               # bf16 store, f32 stats
    psum_ref[0] += jnp.sum(y, axis=1, keepdims=True)
    pssq_ref[0] += jnp.sum(y * y, axis=1, keepdims=True)


def _bn_relu_kernel(y_ref, scale_ref, shift_ref, o_ref):
    """Final pass: out = relu(y*scale+shift)."""
    o_ref[0] = jnp.maximum(y_ref[0].astype(jnp.float32) * scale_ref[...]
                           + shift_ref[...], 0.0)


def _conv_relu_kernel(n_in, *refs):
    """use_bn=False path: out = relu(sum_i W_i @ x_i + b)."""
    x_refs = refs[:n_in]
    w_refs = refs[n_in:2 * n_in]
    b_ref, o_ref = refs[2 * n_in:]
    y = jnp.dot(w_refs[0][...], x_refs[0][0], preferred_element_type=jnp.float32)
    for i in range(1, n_in):
        y = y + jnp.dot(w_refs[i][...], x_refs[i][0],
                        preferred_element_type=jnp.float32)
    o_ref[0] = jnp.maximum(y + b_ref[...], 0.0)


def _fused_bn_kernel(n_in, n_layers, inv_m, eps, *refs):
    """Single-kernel path (small problems): whole activation resident in VMEM.

    refs = x_0..x_{n_in-1} (B,C_i,N) f32,
           w0_0..w0_{n_in-1} (C1,C_i) f32,
           w_1..w_{L-1} (C_{l+1},C_l) f32,
           gamma_0..gamma_{L-1} (C_l,1) f32, beta_0..beta_{L-1} (C_l,1) f32,
           out (B,C_last,N) f32
    """
    k = 0
    x_refs = refs[k:k + n_in]; k += n_in
    w0_refs = refs[k:k + n_in]; k += n_in
    w_refs = refs[k:k + n_layers - 1]; k += n_layers - 1
    g_refs = refs[k:k + n_layers]; k += n_layers
    bt_refs = refs[k:k + n_layers]; k += n_layers
    o_ref = refs[k]

    batch = x_refs[0].shape[0]

    # layer-0 pre-activations, one (C1, N) slab per batch element
    ys = []
    for b in range(batch):
        acc = jnp.dot(w0_refs[0][...], x_refs[0][b],
                      preferred_element_type=jnp.float32)
        for i in range(1, n_in):
            acc = acc + jnp.dot(w0_refs[i][...], x_refs[i][b],
                                preferred_element_type=jnp.float32)
        ys.append(acc)

    xs = ys
    for l in range(n_layers):
        # train-mode BN over all B*N points; centered (numerically stable) var
        s = ys[0].sum(axis=1, keepdims=True)
        for b in range(1, batch):
            s = s + ys[b].sum(axis=1, keepdims=True)
        mean = s * inv_m
        v = jnp.square(ys[0] - mean).sum(axis=1, keepdims=True)
        for b in range(1, batch):
            v = v + jnp.square(ys[b] - mean).sum(axis=1, keepdims=True)
        var = v * inv_m
        scale = g_refs[l][...] * lax.rsqrt(var + eps)
        shift = bt_refs[l][...] - mean * scale
        xs = [jnp.maximum(y * scale + shift, 0.0) for y in ys]
        if l + 1 < n_layers:
            ys = [jnp.dot(w_refs[l][...], x, preferred_element_type=jnp.float32)
                  for x in xs]

    for b in range(batch):
        o_ref[b] = xs[b]


# ---------------------------------------------------------------------------
# Wrapper helpers
# ---------------------------------------------------------------------------

_TILE_BUDGET_BYTES = 10 << 20      # double-buffered act tiles; safe on v5e 16MiB
_FUSED_BUDGET_BYTES = 6 << 20      # resident fused path; safe on v7x 32MiB scoped


def _choose_tile(n, c_act_max):
    """Largest lane-friendly tile dividing N whose double-buffered activation
    tiles (in + out, f32 upper bound) stay under the VMEM budget."""
    candidates = [t for t in (4096, 2048, 1024, 512, 256, 128) if n % t == 0]
    if not candidates:
        # TODO(synk): pad/mask tails when N % 128 != 0 instead of a whole-N block.
        return n
    for t in candidates:
        if 16 * t * c_act_max <= _TILE_BUDGET_BYTES:   # 2 bufs * 2 tiles * 4B
            return t
    return candidates[-1]


def _stream_specs(streams, tn):
    return [pl.BlockSpec((1, s.shape[1], tn), lambda b, n: (b, 0, n))
            for s in streams]


def _const_spec(shape):
    return pl.BlockSpec(shape, lambda b, n: (0, 0))


def _fold_bn(psum, pssq, gamma, beta, inv_m, eps):
    """Combine per-batch partial stats and fold BN into (scale, shift), in JAX."""
    s = jnp.sum(psum, axis=0)          # (C, 1)
    ssq = jnp.sum(pssq, axis=0)        # (C, 1)
    mean = s * inv_m
    var = jnp.maximum(ssq * inv_m - mean * mean, 0.0)
    scale = gamma.reshape(-1, 1) * lax.rsqrt(var + eps)
    shift = beta.reshape(-1, 1) - mean * scale
    return scale, shift


def init_params(key, in_channel, mlp):
    """Synthetic params per layer: (w (Cout,Cin), bias (Cout,), gamma, beta)."""
    params = []
    last = in_channel
    for out_channel in mlp:
        key, kw, kb, kg, kbt = jax.random.split(key, 5)
        bound = 1.0 / jnp.sqrt(jnp.float32(last))
        w = jax.random.uniform(kw, (out_channel, last), jnp.float32, -bound, bound)
        b = jax.random.uniform(kb, (out_channel,), jnp.float32, -bound, bound)
        gamma = jax.random.uniform(kg, (out_channel,), jnp.float32, 0.5, 1.5)
        beta = jax.random.uniform(kbt, (out_channel,), jnp.float32, -0.5, 0.5)
        params.append((w, b, gamma, beta))
        last = out_channel
    return params


# ---------------------------------------------------------------------------
# Forward
# ---------------------------------------------------------------------------

def pointnet_sa_forward(xyz, features, params, eps=1e-5, use_bn=True,
                        force_multipass=False):
    """
    xyz:      (B, 3, N) float32
    features: (B, C, N) float32 or None
    returns:  (xyz, new_features) with new_features (B, mlp[-1], N) float32
    """
    B, _, N = xyz.shape
    streams = [xyz] + ([features] if features is not None else [])
    c_streams = [s.shape[1] for s in streams]
    c_in_total = sum(c_streams)
    c_layers = [w.shape[0] for (w, _, _, _) in params]
    n_layers = len(params)
    inv_m = 1.0 / float(B * N)

    def split_w(w):
        slabs, off = [], 0
        for c in c_streams:
            slabs.append(w[:, off:off + c])
            off += c
        return slabs

    # ------------------------------------------------------------------ fused
    fused_bytes = 4 * B * N * (c_in_total + c_layers[-1] + 2 * max(c_layers))
    if use_bn and not force_multipass and fused_bytes <= _FUSED_BUDGET_BYTES:
        w0_slabs = split_w(params[0][0])
        w_rest = [params[l][0] for l in range(1, n_layers)]
        gammas = [p[2].reshape(-1, 1) for p in params]
        betas = [p[3].reshape(-1, 1) for p in params]
        out = pl.pallas_call(
            functools.partial(_fused_bn_kernel, len(streams), n_layers,
                              inv_m, eps),
            out_shape=jax.ShapeDtypeStruct((B, c_layers[-1], N), jnp.float32),
        )(*streams, *w0_slabs, *w_rest, *gammas, *betas)
        return xyz, out

    # -------------------------------------------------------------- multipass
    c_act_max = max([c_in_total] + c_layers)
    tn = _choose_tile(N, c_act_max)
    grid = (B, N // tn)

    parallel_arb = pltpu.CompilerParams(
        dimension_semantics=("parallel", "arbitrary"))
    parallel_par = pltpu.CompilerParams(
        dimension_semantics=("parallel", "parallel"))

    if not use_bn:
        x_streams = streams
        for li, (w, b, _, _) in enumerate(params):
            w_slabs = split_w(w) if li == 0 else [w]
            c_out = w.shape[0]
            out = pl.pallas_call(
                functools.partial(_conv_relu_kernel, len(x_streams)),
                grid=grid,
                in_specs=(_stream_specs(x_streams, tn)
                          + [_const_spec(ws.shape) for ws in w_slabs]
                          + [_const_spec((c_out, 1))]),
                out_shape=jax.ShapeDtypeStruct((B, c_out, N), jnp.float32),
                out_specs=pl.BlockSpec((1, c_out, tn),
                                       lambda b_, n_: (b_, 0, n_)),
                compiler_params=parallel_par,
            )(*x_streams, *w_slabs, b.reshape(-1, 1))
            x_streams = [out]
        return xyz, x_streams[0]

    # ---- layer 0: matmul + per-batch stats (conv bias cancelled by BN mean) -
    w0_slabs = split_w(params[0][0])
    c1 = c_layers[0]
    y, psum, pssq = pl.pallas_call(
        functools.partial(_matmul_stats_kernel, len(streams)),
        grid=grid,
        in_specs=(_stream_specs(streams, tn)
                  + [_const_spec(ws.shape) for ws in w0_slabs]),
        out_shape=(jax.ShapeDtypeStruct((B, c1, N), jnp.bfloat16),
                   jax.ShapeDtypeStruct((B, c1, 1), jnp.float32),
                   jax.ShapeDtypeStruct((B, c1, 1), jnp.float32)),
        out_specs=(pl.BlockSpec((1, c1, tn), lambda b, n: (b, 0, n)),
                   pl.BlockSpec((1, c1, 1), lambda b, n: (b, 0, 0)),
                   pl.BlockSpec((1, c1, 1), lambda b, n: (b, 0, 0))),
        compiler_params=parallel_arb,
    )(*streams, *w0_slabs)

    # ---- layers 1..L-1: BN+ReLU of layer l-1 fused with matmul of layer l ---
    for li in range(1, n_layers):
        scale, shift = _fold_bn(psum, pssq, params[li - 1][2], params[li - 1][3],
                                inv_m, eps)
        w = params[li][0]
        c_in, c_out = w.shape[1], w.shape[0]
        y, psum, pssq = pl.pallas_call(
            _bn_relu_matmul_stats_kernel,
            grid=grid,
            in_specs=[pl.BlockSpec((1, c_in, tn), lambda b, n: (b, 0, n)),
                      _const_spec((c_in, 1)), _const_spec((c_in, 1)),
                      _const_spec((c_out, c_in))],
            out_shape=(jax.ShapeDtypeStruct((B, c_out, N), jnp.bfloat16),
                       jax.ShapeDtypeStruct((B, c_out, 1), jnp.float32),
                       jax.ShapeDtypeStruct((B, c_out, 1), jnp.float32)),
            out_specs=(pl.BlockSpec((1, c_out, tn), lambda b, n: (b, 0, n)),
                       pl.BlockSpec((1, c_out, 1), lambda b, n: (b, 0, 0)),
                       pl.BlockSpec((1, c_out, 1), lambda b, n: (b, 0, 0))),
            compiler_params=parallel_arb,
        )(y, scale, shift, w)

    # ---- final: BN+ReLU of the last layer (lane-dense, fully parallel) ------
    scale, shift = _fold_bn(psum, pssq, params[-1][2], params[-1][3], inv_m, eps)
    c_last = c_layers[-1]
    out = pl.pallas_call(
        _bn_relu_kernel,
        grid=grid,
        in_specs=[pl.BlockSpec((1, c_last, tn), lambda b, n: (b, 0, n)),
                  _const_spec((c_last, 1)), _const_spec((c_last, 1))],
        out_shape=jax.ShapeDtypeStruct((B, c_last, N), jnp.float32),
        out_specs=pl.BlockSpec((1, c_last, tn), lambda b, n: (b, 0, n)),
        compiler_params=parallel_par,
    )(y, scale, shift)

    return xyz, out


# ---------------------------------------------------------------------------
# Pure-JAX reference (mirrors PyTorch train()-mode forward, incl. conv bias)
# ---------------------------------------------------------------------------

def reference_forward(xyz, features, params, eps=1e-5, use_bn=True):
    x = (jnp.concatenate([xyz, features], axis=1)
         if features is not None else xyz)
    for (w, b, g, beta) in params:
        y = jnp.einsum("oc,bcn->bon", w, x,
                       precision=lax.Precision.HIGHEST) + b[None, :, None]
        if use_bn:
            mean = jnp.mean(y, axis=(0, 2), keepdims=True)
            var = jnp.mean(jnp.square(y - mean), axis=(0, 2), keepdims=True)
            y = ((y - mean) * lax.rsqrt(var + eps)
                 * g[None, :, None] + beta[None, :, None])
        x = jnp.maximum(y, 0.0)
    return x


if __name__ == "__main__":
    key = jax.random.PRNGKey(0)
    k_xyz, k_feat, k_par = jax.random.split(key, 3)

    B, N, C_feat = 2, 256, 4
    mlp = [16, 32]
    in_channel = 3 + C_feat          # xyz concatenated (logically) with features

    xyz = jax.random.normal(k_xyz, (B, 3, N), jnp.float32)
    features = jax.random.normal(k_feat, (B, C_feat, N), jnp.float32)
    params = init_params(k_par, in_channel, mlp)

    ref_bn = jax.block_until_ready(reference_forward(xyz, features, params))

    # 1) fused single-kernel path (auto-selected for this small shape)
    new_xyz, fused_out = pointnet_sa_forward(xyz, features, params)
    jax.block_until_ready((new_xyz, fused_out))
    assert new_xyz.shape == (B, 3, N)
    assert fused_out.shape == (B, mlp[-1], N)
    err = float(jnp.max(jnp.abs(fused_out - ref_bn)))
    assert err < 5e-2, f"fused path error too large: {err}"

    # 2) tiled multi-pass path (bf16 intermediates, per-batch partial stats)
    _, mp_out = pointnet_sa_forward(xyz, features, params, force_multipass=True)
    jax.block_until_ready(mp_out)
    assert mp_out.shape == (B, mlp[-1], N)
    err = float(jnp.max(jnp.abs(mp_out - ref_bn)))
    assert err < 5e-2, f"multipass path error too large: {err}"

    # 3) use_bn=False path
    ref_nb = reference_forward(xyz, features, params, use_bn=False)
    _, nb_out = pointnet_sa_forward(xyz, features, params, use_bn=False)
    jax.block_until_ready(nb_out)
    err = float(jnp.max(jnp.abs(nb_out - ref_nb)))
    assert err < 5e-2, f"no-bn path error too large: {err}"

    print("KERNEL_OK")
</pallas_src>

<mosaic_0001>
module attributes {stable_mosaic.version = 11 : i64} {
  func.func @_fused_bn_kernel(%arg0: memref<2x3x256xf32, #tpu.memory_space<vmem>>, %arg1: memref<2x4x256xf32, #tpu.memory_space<vmem>>, %arg2: memref<16x3xf32, #tpu.memory_space<vmem>>, %arg3: memref<16x4xf32, #tpu.memory_space<vmem>>, %arg4: memref<32x16xf32, #tpu.memory_space<vmem>>, %arg5: memref<16x1xf32, #tpu.memory_space<vmem>>, %arg6: memref<32x1xf32, #tpu.memory_space<vmem>>, %arg7: memref<16x1xf32, #tpu.memory_space<vmem>>, %arg8: memref<32x1xf32, #tpu.memory_space<vmem>>, %arg9: memref<2x32x256xf32, #tpu.memory_space<vmem>>) attributes {dimension_semantics = [], scalar_prefetch = 0 : i64, scratch_operands = 0 : i64, tpu.core_type = #tpu.core_type<tc>} {
    %c0 = arith.constant 0 : index
    %c0_0 = arith.constant 0 : index
    %0 = vector.load %arg2[%c0, %c0_0] : memref<16x3xf32, #tpu.memory_space<vmem>>, vector<16x3xf32>
    %c0_1 = arith.constant 0 : index
    %c0_2 = arith.constant 0 : index
    %c0_3 = arith.constant 0 : index
    %1 = vector.load %arg0[%c0_1, %c0_2, %c0_3] : memref<2x3x256xf32, #tpu.memory_space<vmem>>, vector<1x3x256xf32>
    %2 = vector.shape_cast %1 : vector<1x3x256xf32> to vector<3x256xf32>
    %cst = arith.constant dense<0.000000e+00> : vector<16x256xf32>
    %3 = tpu.matmul %0, %2, %cst {dimension_numbers = #tpu.dot_dimension_numbers<[1], [0], [0], [1], [0, 0, 1, 1], [], []>} : vector<16x3xf32>, vector<3x256xf32>, vector<16x256xf32> -> vector<16x256xf32>
    %c0_4 = arith.constant 0 : index
    %c0_5 = arith.constant 0 : index
    %4 = vector.load %arg3[%c0_4, %c0_5] : memref<16x4xf32, #tpu.memory_space<vmem>>, vector<16x4xf32>
    %c0_6 = arith.constant 0 : index
    %c0_7 = arith.constant 0 : index
    %c0_8 = arith.constant 0 : index
    %5 = vector.load %arg1[%c0_6, %c0_7, %c0_8] : memref<2x4x256xf32, #tpu.memory_space<vmem>>, vector<1x4x256xf32>
    %6 = vector.shape_cast %5 : vector<1x4x256xf32> to vector<4x256xf32>
    %cst_9 = arith.constant dense<0.000000e+00> : vector<16x256xf32>
    %7 = tpu.matmul %4, %6, %cst_9 {dimension_numbers = #tpu.dot_dimension_numbers<[1], [0], [0], [1], [0, 0, 1, 1], [], []>} : vector<16x4xf32>, vector<4x256xf32>, vector<16x256xf32> -> vector<16x256xf32>
    %8 = arith.addf %3, %7 : vector<16x256xf32>
    %c0_10 = arith.constant 0 : index
    %c0_11 = arith.constant 0 : index
    %9 = vector.load %arg2[%c0_10, %c0_11] : memref<16x3xf32, #tpu.memory_space<vmem>>, vector<16x3xf32>
    %c1 = arith.constant 1 : index
    %c0_12 = arith.constant 0 : index
    %c0_13 = arith.constant 0 : index
    %10 = vector.load %arg0[%c1, %c0_12, %c0_13] : memref<2x3x256xf32, #tpu.memory_space<vmem>>, vector<1x3x256xf32>
    %11 = vector.shape_cast %10 : vector<1x3x256xf32> to vector<3x256xf32>
    %cst_14 = arith.constant dense<0.000000e+00> : vector<16x256xf32>
    %12 = tpu.matmul %9, %11, %cst_14 {dimension_numbers = #tpu.dot_dimension_numbers<[1], [0], [0], [1], [0, 0, 1, 1], [], []>} : vector<16x3xf32>, vector<3x256xf32>, vector<16x256xf32> -> vector<16x256xf32>
    %c0_15 = arith.constant 0 : index
    %c0_16 = arith.constant 0 : index
    %13 = vector.load %arg3[%c0_15, %c0_16] : memref<16x4xf32, #tpu.memory_space<vmem>>, vector<16x4xf32>
    %c1_17 = arith.constant 1 : index
    %c0_18 = arith.constant 0 : index
    %c0_19 = arith.constant 0 : index
    %14 = vector.load %arg1[%c1_17, %c0_18, %c0_19] : memref<2x4x256xf32, #tpu.memory_space<vmem>>, vector<1x4x256xf32>
    %15 = vector.shape_cast %14 : vector<1x4x256xf32> to vector<4x256xf32>
    %cst_20 = arith.constant dense<0.000000e+00> : vector<16x256xf32>
    %16 = tpu.matmul %13, %15, %cst_20 {dimension_numbers = #tpu.dot_dimension_numbers<[1], [0], [0], [1], [0, 0, 1, 1], [], []>} : vector<16x4xf32>, vector<4x256xf32>, vector<16x256xf32> -> vector<16x256xf32>
    %17 = arith.addf %12, %16 : vector<16x256xf32>
    %cst_21 = arith.constant dense<0.000000e+00> : vector<16xf32>
    %18 = vector.multi_reduction <add>, %8, %cst_21 [1] : vector<16x256xf32> to vector<16xf32>
    %19 = vector.shape_cast %18 : vector<16xf32> to vector<16x1xf32>
    %cst_22 = arith.constant dense<0.000000e+00> : vector<16xf32>
    %20 = vector.multi_reduction <add>, %17, %cst_22 [1] : vector<16x256xf32> to vector<16xf32>
    %21 = vector.shape_cast %20 : vector<16xf32> to vector<16x1xf32>
    %22 = arith.addf %19, %21 : vector<16x1xf32>
    %cst_23 = arith.constant 0.001953125 : f32
    %23 = vector.broadcast %cst_23 : f32 to vector<16x1xf32>
    %24 = arith.mulf %22, %23 : vector<16x1xf32>
    %25 = vector.broadcast %24 : vector<16x1xf32> to vector<16x256xf32>
    %26 = arith.subf %8, %25 : vector<16x256xf32>
    %27 = arith.mulf %26, %26 : vector<16x256xf32>
    %cst_24 = arith.constant dense<0.000000e+00> : vector<16xf32>
    %28 = vector.multi_reduction <add>, %27, %cst_24 [1] : vector<16x256xf32> to vector<16xf32>
    %29 = vector.shape_cast %28 : vector<16xf32> to vector<16x1xf32>
    %30 = vector.broadcast %24 : vector<16x1xf32> to vector<16x256xf32>
    %31 = arith.subf %17, %30 : vector<16x256xf32>
    %32 = arith.mulf %31, %31 : vector<16x256xf32>
    %cst_25 = arith.constant dense<0.000000e+00> : vector<16xf32>
    %33 = vector.multi_reduction <add>, %32, %cst_25 [1] : vector<16x256xf32> to vector<16xf32>
    %34 = vector.shape_cast %33 : vector<16xf32> to vector<16x1xf32>
    %35 = arith.addf %29, %34 : vector<16x1xf32>
    %cst_26 = arith.constant 0.001953125 : f32
    %36 = vector.broadcast %cst_26 : f32 to vector<16x1xf32>
    %37 = arith.mulf %35, %36 : vector<16x1xf32>
    %c0_27 = arith.constant 0 : index
    %c0_28 = arith.constant 0 : index
    %38 = vector.load %arg5[%c0_27, %c0_28] : memref<16x1xf32, #tpu.memory_space<vmem>>, vector<16x1xf32>
    %cst_29 = arith.constant 9.99999974E-6 : f32
    %39 = vector.broadcast %cst_29 : f32 to vector<16x1xf32>
    %40 = arith.addf %37, %39 : vector<16x1xf32>
    %41 = math.rsqrt %40 : vector<16x1xf32>
    %42 = arith.mulf %38, %41 : vector<16x1xf32>
    %c0_30 = arith.constant 0 : index
    %c0_31 = arith.constant 0 : index
    %43 = vector.load %arg7[%c0_30, %c0_31] : memref<16x1xf32, #tpu.memory_space<vmem>>, vector<16x1xf32>
    %44 = arith.mulf %24, %42 : vector<16x1xf32>
    %45 = arith.subf %43, %44 : vector<16x1xf32>
    %46 = vector.broadcast %42 : vector<16x1xf32> to vector<16x256xf32>
    %47 = arith.mulf %8, %46 : vector<16x256xf32>
    %48 = vector.broadcast %45 : vector<16x1xf32> to vector<16x256xf32>
    %49 = arith.addf %47, %48 : vector<16x256xf32>
    %cst_32 = arith.constant 0.000000e+00 : f32
    %50 = vector.broadcast %cst_32 : f32 to vector<16x256xf32>
    %51 = arith.maximumf %49, %50 : vector<16x256xf32>
    %52 = vector.broadcast %42 : vector<16x1xf32> to vector<16x256xf32>
    %53 = arith.mulf %17, %52 : vector<16x256xf32>
    %54 = vector.broadcast %45 : vector<16x1xf32> to vector<16x256xf32>
    %55 = arith.addf %53, %54 : vector<16x256xf32>
    %cst_33 = arith.constant 0.000000e+00 : f32
    %56 = vector.broadcast %cst_33 : f32 to vector<16x256xf32>
    %57 = arith.maximumf %55, %56 : vector<16x256xf32>
    %c0_34 = arith.constant 0 : index
    %c0_35 = arith.constant 0 : index
    %58 = vector.load %arg4[%c0_34, %c0_35] : memref<32x16xf32, #tpu.memory_space<vmem>>, vector<32x16xf32>
    %cst_36 = arith.constant dense<0.000000e+00> : vector<32x256xf32>
    %59 = tpu.matmul %58, %51, %cst_36 {dimension_numbers = #tpu.dot_dimension_numbers<[1], [0], [0], [1], [0, 0, 1, 1], [], []>} : vector<32x16xf32>, vector<16x256xf32>, vector<32x256xf32> -> vector<32x256xf32>
    %c0_37 = arith.constant 0 : index
    %c0_38 = arith.constant 0 : index
    %60 = vector.load %arg4[%c0_37, %c0_38] : memref<32x16xf32, #tpu.memory_space<vmem>>, vector<32x16xf32>
    %cst_39 = arith.constant dense<0.000000e+00> : vector<32x256xf32>
    %61 = tpu.matmul %60, %57, %cst_39 {dimension_numbers = #tpu.dot_dimension_numbers<[1], [0], [0], [1], [0, 0, 1, 1], [], []>} : vector<32x16xf32>, vector<16x256xf32>, vector<32x256xf32> -> vector<32x256xf32>
    %cst_40 = arith.constant dense<0.000000e+00> : vector<32xf32>
    %62 = vector.multi_reduction <add>, %59, %cst_40 [1] : vector<32x256xf32> to vector<32xf32>
    %63 = vector.shape_cast %62 : vector<32xf32> to vector<32x1xf32>
    %cst_41 = arith.constant dense<0.000000e+00> : vector<32xf32>
    %64 = vector.multi_reduction <add>, %61, %cst_41 [1] : vector<32x256xf32> to vector<32xf32>
    %65 = vector.shape_cast %64 : vector<32xf32> to vector<32x1xf32>
    %66 = arith.addf %63, %65 : vector<32x1xf32>
    %cst_42 = arith.constant 0.001953125 : f32
    %67 = vector.broadcast %cst_42 : f32 to vector<32x1xf32>
    %68 = arith.mulf %66, %67 : vector<32x1xf32>
    %69 = vector.broadcast %68 : vector<32x1xf32> to vector<32x256xf32>
    %70 = arith.subf %59, %69 : vector<32x256xf32>
    %71 = arith.mulf %70, %70 : vector<32x256xf32>
    %cst_43 = arith.constant dense<0.000000e+00> : vector<32xf32>
    %72 = vector.multi_reduction <add>, %71, %cst_43 [1] : vector<32x256xf32> to vector<32xf32>
    %73 = vector.shape_cast %72 : vector<32xf32> to vector<32x1xf32>
    %74 = vector.broadcast %68 : vector<32x1xf32> to vector<32x256xf32>
    %75 = arith.subf %61, %74 : vector<32x256xf32>
    %76 = arith.mulf %75, %75 : vector<32x256xf32>
    %cst_44 = arith.constant dense<0.000000e+00> : vector<32xf32>
    %77 = vector.multi_reduction <add>, %76, %cst_44 [1] : vector<32x256xf32> to vector<32xf32>
    %78 = vector.shape_cast %77 : vector<32xf32> to vector<32x1xf32>
    %79 = arith.addf %73, %78 : vector<32x1xf32>
    %cst_45 = arith.constant 0.001953125 : f32
    %80 = vector.broadcast %cst_45 : f32 to vector<32x1xf32>
    %81 = arith.mulf %79, %80 : vector<32x1xf32>
    %c0_46 = arith.constant 0 : index
    %c0_47 = arith.constant 0 : index
    %82 = vector.load %arg6[%c0_46, %c0_47] : memref<32x1xf32, #tpu.memory_space<vmem>>, vector<32x1xf32>
    %cst_48 = arith.constant 9.99999974E-6 : f32
    %83 = vector.broadcast %cst_48 : f32 to vector<32x1xf32>
    %84 = arith.addf %81, %83 : vector<32x1xf32>
    %85 = math.rsqrt %84 : vector<32x1xf32>
    %86 = arith.mulf %82, %85 : vector<32x1xf32>
    %c0_49 = arith.constant 0 : index
    %c0_50 = arith.constant 0 : index
    %87 = vector.load %arg8[%c0_49, %c0_50] : memref<32x1xf32, #tpu.memory_space<vmem>>, vector<32x1xf32>
    %88 = arith.mulf %68, %86 : vector<32x1xf32>
    %89 = arith.subf %87, %88 : vector<32x1xf32>
    %90 = vector.broadcast %86 : vector<32x1xf32> to vector<32x256xf32>
    %91 = arith.mulf %59, %90 : vector<32x256xf32>
    %92 = vector.broadcast %89 : vector<32x1xf32> to vector<32x256xf32>
    %93 = arith.addf %91, %92 : vector<32x256xf32>
    %cst_51 = arith.constant 0.000000e+00 : f32
    %94 = vector.broadcast %cst_51 : f32 to vector<32x256xf32>
    %95 = arith.maximumf %93, %94 : vector<32x256xf32>
    %96 = vector.broadcast %86 : vector<32x1xf32> to vector<32x256xf32>
    %97 = arith.mulf %61, %96 : vector<32x256xf32>
    %98 = vector.broadcast %89 : vector<32x1xf32> to vector<32x256xf32>
    %99 = arith.addf %97, %98 : vector<32x256xf32>
    %cst_52 = arith.constant 0.000000e+00 : f32
    %100 = vector.broadcast %cst_52 : f32 to vector<32x256xf32>
    %101 = arith.maximumf %99, %100 : vector<32x256xf32>
    %c0_53 = arith.constant 0 : index
    %c0_54 = arith.constant 0 : index
    %c0_55 = arith.constant 0 : index
    %102 = vector.load %arg9[%c0_53, %c0_54, %c0_55] : memref<2x32x256xf32, #tpu.memory_space<vmem>>, vector<1x32x256xf32>
    %103 = vector.shape_cast %102 : vector<1x32x256xf32> to vector<32x256xf32>
    %104 = vector.shape_cast %95 : vector<32x256xf32> to vector<1x32x256xf32>
    tpu.vector_store %arg9[%c0_53, %c0_54, %c0_55], %104 {strides = array<i32>} : memref<2x32x256xf32, #tpu.memory_space<vmem>>, vector<1x32x256xf32>,
    %c1_56 = arith.constant 1 : index
    %c0_57 = arith.constant 0 : index
    %c0_58 = arith.constant 0 : index
    %105 = vector.load %arg9[%c1_56, %c0_57, %c0_58] : memref<2x32x256xf32, #tpu.memory_space<vmem>>, vector<1x32x256xf32>
    %106 = vector.shape_cast %105 : vector<1x32x256xf32> to vector<32x256xf32>
    %107 = vector.shape_cast %101 : vector<32x256xf32> to vector<1x32x256xf32>
    tpu.vector_store %arg9[%c1_56, %c0_57, %c0_58], %107 {strides = array<i32>} : memref<2x32x256xf32, #tpu.memory_space<vmem>>, vector<1x32x256xf32>,
    return
  }
}

</mosaic_0001>

<llo_original>
// kernel: tpu_custom_call.1
$region0: #{tpu_custom_call.1}
  #allocation0 [shape = 'u32[]', space=smem, size = 0x4, offset = 0x4, fixed_abs, tag = 'smem constant byte address 0x4 - core index']
  #allocation1 [shape = 'u32[144,128]{1,0:T(1,128)}', space=vmem, size = 0x12000, scoped, tag = 'internal scratch']
  %s0 = inlined_call_operand.vmem [shape: f32[2,3,256], index: 0, kind: input, shape index: {}]
  %s1 = inlined_call_operand.vmem [shape: f32[2,4,256], index: 1, kind: input, shape index: {}]
  %s2 = inlined_call_operand.vmem [shape: f32[16,3], index: 2, kind: input, shape index: {}]
  %s3 = inlined_call_operand.vmem [shape: f32[16,4], index: 3, kind: input, shape index: {}]
  %s4 = inlined_call_operand.vmem [shape: f32[32,16], index: 4, kind: input, shape index: {}]
  %s5 = inlined_call_operand.vmem [shape: f32[16,1], index: 5, kind: input, shape index: {}]
  %s6 = inlined_call_operand.vmem [shape: f32[32,1], index: 6, kind: input, shape index: {}]
  %s7 = inlined_call_operand.vmem [shape: f32[16,1], index: 7, kind: input, shape index: {}]
  %s8 = inlined_call_operand.vmem [shape: f32[32,1], index: 8, kind: input, shape index: {}]
  %s9 = inlined_call_operand.hbm [shape: f32[2,32,256], index: 9, kind: output, shape index: {}]
  %s10 = sld [smem:[#allocation0]]
  $region46: #{tpu_custom_call.1} parent=0
    _
  %s12 = ssub.s32 1, %s10
  %s13 = scalar_select 0, %s12, %s10
  $region1: #{tpu_custom_call.1} parent=0
    #allocation2 [shape = 'u8[65536]{0}', space=vmem, size = 0x10000, scoped, tag = 'output window, operand 0, single buffered']
    #allocation3 [shape = 's32[1]{0}', space=sflag, size = 0x4, scoped, tag = 'scoped memory for tpu_custom_call.1']
    %14 = vsyncpa [#allocation3], 0
    // Predicated region
    $region2: #{tpu_custom_call.1} parent=1 // pred_check
      _
    $region3: #{tpu_custom_call.1} parent=1 // pred_check_branch
      %16 = sbr.rel (0) target = $region5
    $region4: #{tpu_custom_call.1} parent=1 // pred_region
      _
    $region5: #{tpu_custom_call.1} parent=1 // pred_fallthru
      _
    // Predicated region
    $region6: #{tpu_custom_call.1} parent=1 // pred_check
      _
    $region7: #{tpu_custom_call.1} parent=1 // pred_check_branch
      %18 = sbr.rel (0) target = $region9
    $region8: #{tpu_custom_call.1} parent=1 // pred_region
      _
    $region9: #{tpu_custom_call.1} parent=1 // pred_fallthru
      _
    // Predicated region
    $region10: #{tpu_custom_call.1} parent=1 // pred_check
      _
    $region11: #{tpu_custom_call.1} parent=1 // pred_check_branch
      %20 = sbr.rel (0) target = $region13
    $region12: #{tpu_custom_call.1} parent=1 // pred_region
      _
    $region13: #{tpu_custom_call.1} parent=1 // pred_fallthru
      _
    // Predicated region
    $region14: #{tpu_custom_call.1} parent=1 // pred_check
      _
    $region15: #{tpu_custom_call.1} parent=1 // pred_check_branch
      %22 = sbr.rel (0) target = $region17
    $region16: #{tpu_custom_call.1} parent=1 // pred_region
      _
    $region17: #{tpu_custom_call.1} parent=1 // pred_fallthru
      _
    // Predicated region
    $region18: #{tpu_custom_call.1} parent=1 // pred_check
      _
    $region19: #{tpu_custom_call.1} parent=1 // pred_check_branch
      %24 = sbr.rel (0) target = $region21
    $region20: #{tpu_custom_call.1} parent=1 // pred_region
      _
    $region21: #{tpu_custom_call.1} parent=1 // pred_fallthru
      _
    // Predicated region
    $region22: #{tpu_custom_call.1} parent=1 // pred_check
      _
    $region23: #{tpu_custom_call.1} parent=1 // pred_check_branch
      %26 = sbr.rel (0) target = $region25
    $region24: #{tpu_custom_call.1} parent=1 // pred_region
      _
    $region25: #{tpu_custom_call.1} parent=1 // pred_fallthru
      _
    // Predicated region
    $region26: #{tpu_custom_call.1} parent=1 // pred_check
      _
    $region27: #{tpu_custom_call.1} parent=1 // pred_check_branch
      %28 = sbr.rel (0) target = $region29
    $region28: #{tpu_custom_call.1} parent=1 // pred_region
      _
    $region29: #{tpu_custom_call.1} parent=1 // pred_fallthru
      _
    // Predicated region
    $region30: #{tpu_custom_call.1} parent=1 // pred_check
      _
    $region31: #{tpu_custom_call.1} parent=1 // pred_check_branch
      %30 = sbr.rel (0) target = $region33
    $region32: #{tpu_custom_call.1} parent=1 // pred_region
      _
    $region33: #{tpu_custom_call.1} parent=1 // pred_fallthru
      _
    // Predicated region
    $region34: #{tpu_custom_call.1} parent=1 // pred_check
      _
    $region35: #{tpu_custom_call.1} parent=1 // pred_check_branch
      %32 = sbr.rel (0) target = $region37
    $region36: #{tpu_custom_call.1} parent=1 // pred_region
      _
    $region37: #{tpu_custom_call.1} parent=1 // pred_fallthru
      _
    %v33 = vld [vmem:[%s2] sm:$0xff]
    %v34 = vld [vmem:[%s2 + $0x8] sm:$0xff]
    %v35 = vld [vmem:[%s0] sm:$0x77]
    %v36 = vld [vmem:[%s3] sm:$0xff]
    %v37 = vld [vmem:[%s3 + $0x8] sm:$0xff]
    %v38 = vld [vmem:[%s1] sm:$0xff]
    %v40 = vcombine.high %v38, %v38
    %vm41 = vcmask 31744
    %v43 = vsel %vm41, %v36, 0
    %v46 = vsel %vm41, %v37, 0
    %vm48 = vcmask 1043456
    %v49 = vsel %vm48, %v38, 0
    %v51 = vsel %vm48, %v40, 0
    %53 = vmatprep.subr.mxu0 0.0
    %54 = vmatpush1.msra.mxu0 0.0
    %55 = vmatprep.subr.mxu0 0.0
    %56 = vmatpush1.msra.mxu0 0.0
    %57 = vmatprep.subr.mxu0 0.0
    %58 = vmatpush1.msra.mxu0 0.0
    %59 = vmatprep.subr.mxu0 0.0
    %60 = vmatpush1.msra.mxu0 0.0
    %61 = vmatprep.subr.mxu0 0.0
    %62 = vmatpush1.msra.mxu0 0.0
    %63 = vmatprep.subr.mxu0 0.0
    %64 = vmatpush1.msra.mxu0 0.0
    %65 = vmatprep.subr.mxu0 0.0
    %66 = vmatpush1.msra.mxu0 0.0
    %67 = vmatprep.subr.mxu0 0.0
    %68 = vmatpush1.msra.mxu0 0.0
    %69 = vmatprep.subr.mxu0 0.0
    %70 = vmatpush1.msra.mxu0 0.0
    %71 = vmatprep.subr.mxu0 0.0
    %72 = vmatpush1.msra.mxu0 0.0
    %73 = vmatprep.subr.mxu0 0.0
    %74 = vmatpush1.msra.mxu0 0.0
    %75 = vmatprep.subr.mxu0 0.0
    %76 = vmatpush1.msra.mxu0 0.0
    %77 = vmatprep.subr.mxu0 0.0
    %78 = vmatpush1.msra.mxu0 0.0
    %79 = vmatprep.subr.mxu0 0.0
    %80 = vmatpush1.msra.mxu0 0.0
    %81 = vmatprep.subr.mxu0 0.0
    %82 = vmatpush1.msra.mxu0 0.0
    %83 = vmatprep.subr.mxu0 %v51
    %84 = vmatpush1.msra.mxu0 %v49
    %85 = vmatprep.subr.mxu0 0.0
    %86 = vmatpush2.msra.mxu0 0.0
    %87 = vmatprep.subr.mxu0 0.0
    %88 = vmatpush2.msra.mxu0 0.0
    %89 = vmatprep.subr.mxu0 0.0
    %90 = vmatpush2.msra.mxu0 0.0
    %91 = vmatprep.subr.mxu0 0.0
    %92 = vmatpush2.msra.mxu0 0.0
    %93 = vmatprep.subr.mxu0 0.0
    %94 = vmatpush2.msra.mxu0 0.0
    %95 = vmatprep.subr.mxu0 0.0
    %96 = vmatpush2.msra.mxu0 0.0
    %97 = vmatprep.subr.mxu0 0.0
    %98 = vmatpush2.msra.mxu0 0.0
    %99 = vmatprep.subr.mxu0 0.0
    %100 = vmatpush2.msra.mxu0 0.0
    %101 = vmatprep.subr.mxu0 0.0
    %102 = vmatpush2.msra.mxu0 0.0
    %103 = vmatprep.subr.mxu0 0.0
    %104 = vmatpush2.msra.mxu0 0.0
    %105 = vmatprep.subr.mxu0 0.0
    %106 = vmatpush2.msra.mxu0 0.0
    %107 = vmatprep.subr.mxu0 0.0
    %108 = vmatpush2.msra.mxu0 0.0
    %109 = vmatprep.subr.mxu0 0.0
    %110 = vmatpush2.msra.mxu0 0.0
    %111 = vmatprep.subr.mxu0 0.0
    %112 = vmatpush2.msra.mxu0 0.0
    %113 = vmatprep.subr.mxu0 0.0
    %114 = vmatpush2.msra.mxu0 0.0
    %115 = vmatprep.subr.mxu0 0.0
    %116 = vmatpush2.msra.mxu0 0.0
    %117 = vmatprep.mubr.f32.mxu0 0.0
    %118 = vmatmul.mubr.f32.gmra.mxu0 %v43
    %v119 = vpop.f32.mrf.mxu0
    %v120 = vadd.f32 0.0, %v119
    %v121 = vpop.f32.mrf.mxu0
    %v122 = vadd.f32 0.0, %v121
    %123 = vmatprep.mubr.f32.mxu0 0.0
    %124 = vmatmul.mubr.f32.gmra.mxu0 %v46
    %v125 = vpop.f32.mrf.mxu0
    %v126 = vadd.f32 0.0, %v125
    %v127 = vpop.f32.mrf.mxu0
    %v128 = vadd.f32 0.0, %v127
    %129 = vdwg.mxu0
    %v131 = vcombine.high %v35, %v35
    %vm132 = vcmask 23552
    %v134 = vsel %vm132, %v33, 0
    %v137 = vsel %vm132, %v34, 0
    %vm139 = vcmask 1042432
    %v140 = vsel %vm139, %v35, 0
    %v142 = vsel %vm139, %v131, 0
    %144 = vmatprep.subr.mxu0 0.0
    %145 = vmatpush1.msra.mxu0 0.0
    %146 = vmatprep.subr.mxu0 0.0
    %147 = vmatpush1.msra.mxu0 0.0
    %148 = vmatprep.subr.mxu0 0.0
    %149 = vmatpush1.msra.mxu0 0.0
    %150 = vmatprep.subr.mxu0 0.0
    %151 = vmatpush1.msra.mxu0 0.0
    %152 = vmatprep.subr.mxu0 0.0
    %153 = vmatpush1.msra.mxu0 0.0
    %154 = vmatprep.subr.mxu0 0.0
    %155 = vmatpush1.msra.mxu0 0.0
    %156 = vmatprep.subr.mxu0 0.0
    %157 = vmatpush1.msra.mxu0 0.0
    %158 = vmatprep.subr.mxu0 0.0
    %159 = vmatpush1.msra.mxu0 0.0
    %160 = vmatprep.subr.mxu0 0.0
    %161 = vmatpush1.msra.mxu0 0.0
    %162 = vmatprep.subr.mxu0 0.0
    %163 = vmatpush1.msra.mxu0 0.0
    %164 = vmatprep.subr.mxu0 0.0
    %165 = vmatpush1.msra.mxu0 0.0
    %166 = vmatprep.subr.mxu0 0.0
    %167 = vmatpush1.msra.mxu0 0.0
    %168 = vmatprep.subr.mxu0 0.0
    %169 = vmatpush1.msra.mxu0 0.0
    %170 = vmatprep.subr.mxu0 0.0
    %171 = vmatpush1.msra.mxu0 0.0
    %172 = vmatprep.subr.mxu0 0.0
    %173 = vmatpush1.msra.mxu0 0.0
    %174 = vmatprep.subr.mxu0 %v142
    %175 = vmatpush1.msra.mxu0 %v140
    %176 = vmatprep.subr.mxu0 0.0
    %177 = vmatpush2.msra.mxu0 0.0
    %178 = vmatprep.subr.mxu0 0.0
    %179 = vmatpush2.msra.mxu0 0.0
    %180 = vmatprep.subr.mxu0 0.0
    %181 = vmatpush2.msra.mxu0 0.0
    %182 = vmatprep.subr.mxu0 0.0
    %183 = vmatpush2.msra.mxu0 0.0
    %184 = vmatprep.subr.mxu0 0.0
    %185 = vmatpush2.msra.mxu0 0.0
    %186 = vmatprep.subr.mxu0 0.0
    %187 = vmatpush2.msra.mxu0 0.0
    %188 = vmatprep.subr.mxu0 0.0
    %189 = vmatpush2.msra.mxu0 0.0
    %190 = vmatprep.subr.mxu0 0.0
    %191 = vmatpush2.msra.mxu0 0.0
    %192 = vmatprep.subr.mxu0 0.0
    %193 = vmatpush2.msra.mxu0 0.0
    %194 = vmatprep.subr.mxu0 0.0
    %195 = vmatpush2.msra.mxu0 0.0
    %196 = vmatprep.subr.mxu0 0.0
    %197 = vmatpush2.msra.mxu0 0.0
    %198 = vmatprep.subr.mxu0 0.0
    %199 = vmatpush2.msra.mxu0 0.0
    %200 = vmatprep.subr.mxu0 0.0
    %201 = vmatpush2.msra.mxu0 0.0
    %202 = vmatprep.subr.mxu0 0.0
    %203 = vmatpush2.msra.mxu0 0.0
    %204 = vmatprep.subr.mxu0 0.0
    %205 = vmatpush2.msra.mxu0 0.0
    %206 = vmatprep.subr.mxu0 0.0
    %207 = vmatpush2.msra.mxu0 0.0
    %208 = vmatprep.mubr.f32.mxu0 0.0
    %209 = vmatmul.mubr.f32.gmra.mxu0 %v134
    %v210 = vpop.f32.mrf.mxu0
    %v211 = vadd.f32 %v120, %v210
    %v212 = vpop.f32.mrf.mxu0
    %v213 = vadd.f32 %v122, %v212
    %214 = vmatprep.mubr.f32.mxu0 0.0
    %215 = vmatmul.mubr.f32.gmra.mxu0 %v137
    %v216 = vpop.f32.mrf.mxu0
    %v217 = vadd.f32 %v126, %v216
    %v218 = vpop.f32.mrf.mxu0
    %v219 = vadd.f32 %v128, %v218
    %220 = vdwg.mxu0
    %s221 = scalar_lea.vmem %s0, 8
    %v222 = vld [vmem:[%s221] sm:$0x77]
    %s223 = scalar_lea.vmem %s1, 8
    %v224 = vld [vmem:[%s223] sm:$0xff]
    %v226 = vcombine.high %v224, %v224
    %v227 = vsel %vm48, %v224, 0
    %v229 = vsel %vm48, %v226, 0
    %231 = vmatprep.subr.mxu0 0.0
    %232 = vmatpush1.msra.mxu0 0.0
    %233 = vmatprep.subr.mxu0 0.0
    %234 = vmatpush1.msra.mxu0 0.0
    %235 = vmatprep.subr.mxu0 0.0
    %236 = vmatpush1.msra.mxu0 0.0
    %237 = vmatprep.subr.mxu0 0.0
    %238 = vmatpush1.msra.mxu0 0.0
    %239 = vmatprep.subr.mxu0 0.0
    %240 = vmatpush1.msra.mxu0 0.0
    %241 = vmatprep.subr.mxu0 0.0
    %242 = vmatpush1.msra.mxu0 0.0
    %243 = vmatprep.subr.mxu0 0.0
    %244 = vmatpush1.msra.mxu0 0.0
    %245 = vmatprep.subr.mxu0 0.0
    %246 = vmatpush1.msra.mxu0 0.0
    %247 = vmatprep.subr.mxu0 0.0
    %248 = vmatpush1.msra.mxu0 0.0
    %249 = vmatprep.subr.mxu0 0.0
    %250 = vmatpush1.msra.mxu0 0.0
    %251 = vmatprep.subr.mxu0 0.0
    %252 = vmatpush1.msra.mxu0 0.0
    %253 = vmatprep.subr.mxu0 0.0
    %254 = vmatpush1.msra.mxu0 0.0
    %255 = vmatprep.subr.mxu0 0.0
    %256 = vmatpush1.msra.mxu0 0.0
    %257 = vmatprep.subr.mxu0 0.0
    %258 = vmatpush1.msra.mxu0 0.0
    %259 = vmatprep.subr.mxu0 0.0
    %260 = vmatpush1.msra.mxu0 0.0
    %261 = vmatprep.subr.mxu0 %v229
    %262 = vmatpush1.msra.mxu0 %v227
    %263 = vmatprep.subr.mxu0 0.0
    %264 = vmatpush2.msra.mxu0 0.0
    %265 = vmatprep.subr.mxu0 0.0
    %266 = vmatpush2.msra.mxu0 0.0
    %267 = vmatprep.subr.mxu0 0.0
    %268 = vmatpush2.msra.mxu0 0.0
    %269 = vmatprep.subr.mxu0 0.0
    %270 = vmatpush2.msra.mxu0 0.0
    %271 = vmatprep.subr.mxu0 0.0
    %272 = vmatpush2.msra.mxu0 0.0
    %273 = vmatprep.subr.mxu0 0.0
    %274 = vmatpush2.msra.mxu0 0.0
    %275 = vmatprep.subr.mxu0 0.0
    %276 = vmatpush2.msra.mxu0 0.0
    %277 = vmatprep.subr.mxu0 0.0
    %278 = vmatpush2.msra.mxu0 0.0
    %279 = vmatprep.subr.mxu0 0.0
    %280 = vmatpush2.msra.mxu0 0.0
    %281 = vmatprep.subr.mxu0 0.0
    %282 = vmatpush2.msra.mxu0 0.0
    %283 = vmatprep.subr.mxu0 0.0
    %284 = vmatpush2.msra.mxu0 0.0
    %285 = vmatprep.subr.mxu0 0.0
    %286 = vmatpush2.msra.mxu0 0.0
    %287 = vmatprep.subr.mxu0 0.0
    %288 = vmatpush2.msra.mxu0 0.0
    %289 = vmatprep.subr.mxu0 0.0
    %290 = vmatpush2.msra.mxu0 0.0
    %291 = vmatprep.subr.mxu0 0.0
    %292 = vmatpush2.msra.mxu0 0.0
    %293 = vmatprep.subr.mxu0 0.0
    %294 = vmatpush2.msra.mxu0 0.0
    %295 = vmatprep.mubr.f32.mxu0 0.0
    %296 = vmatmul.mubr.f32.gmra.mxu0 %v43
    %v297 = vpop.f32.mrf.mxu0
    %v298 = vadd.f32 0.0, %v297
    %v299 = vpop.f32.mrf.mxu0
    %v300 = vadd.f32 0.0, %v299
    %301 = vmatprep.mubr.f32.mxu0 0.0
    %302 = vmatmul.mubr.f32.gmra.mxu0 %v46
    %v303 = vpop.f32.mrf.mxu0
    %v304 = vadd.f32 0.0, %v303
    %v305 = vpop.f32.mrf.mxu0
    %v306 = vadd.f32 0.0, %v305
    %307 = vdwg.mxu0
    %v309 = vcombine.high %v222, %v222
    %v310 = vsel %vm139, %v222, 0
    %v312 = vsel %vm139, %v309, 0
    %314 = vmatprep.subr.mxu0 0.0
    %315 = vmatpush1.msra.mxu0 0.0
    %316 = vmatprep.subr.mxu0 0.0
    %317 = vmatpush1.msra.mxu0 0.0
    %318 = vmatprep.subr.mxu0 0.0
    %319 = vmatpush1.msra.mxu0 0.0
    %320 = vmatprep.subr.mxu0 0.0
    %321 = vmatpush1.msra.mxu0 0.0
    %322 = vmatprep.subr.mxu0 0.0
    %323 = vmatpush1.msra.mxu0 0.0
    %324 = vmatprep.subr.mxu0 0.0
    %325 = vmatpush1.msra.mxu0 0.0
    %326 = vmatprep.subr.mxu0 0.0
    %327 = vmatpush1.msra.mxu0 0.0
    %328 = vmatprep.subr.mxu0 0.0
    %329 = vmatpush1.msra.mxu0 0.0
    %330 = vmatprep.subr.mxu0 0.0
    %331 = vmatpush1.msra.mxu0 0.0
    %332 = vmatprep.subr.mxu0 0.0
    %333 = vmatpush1.msra.mxu0 0.0
    %334 = vmatprep.subr.mxu0 0.0
    %335 = vmatpush1.msra.mxu0 0.0
    %336 = vmatprep.subr.mxu0 0.0
    %337 = vmatpush1.msra.mxu0 0.0
    %338 = vmatprep.subr.mxu0 0.0
    %339 = vmatpush1.msra.mxu0 0.0
    %340 = vmatprep.subr.mxu0 0.0
    %341 = vmatpush1.msra.mxu0 0.0
    %342 = vmatprep.subr.mxu0 0.0
    %343 = vmatpush1.msra.mxu0 0.0
    %344 = vmatprep.subr.mxu0 %v312
    %345 = vmatpush1.msra.mxu0 %v310
    %346 = vmatprep.subr.mxu0 0.0
    %347 = vmatpush2.msra.mxu0 0.0
    %348 = vmatprep.subr.mxu0 0.0
    %349 = vmatpush2.msra.mxu0 0.0
    %350 = vmatprep.subr.mxu0 0.0
    %351 = vmatpush2.msra.mxu0 0.0
    %352 = vmatprep.subr.mxu0 0.0
    %353 = vmatpush2.msra.mxu0 0.0
    %354 = vmatprep.subr.mxu0 0.0
    %355 = vmatpush2.msra.mxu0 0.0
    %356 = vmatprep.subr.mxu0 0.0
    %357 = vmatpush2.msra.mxu0 0.0
    %358 = vmatprep.subr.mxu0 0.0
    %359 = vmatpush2.msra.mxu0 0.0
    %360 = vmatprep.subr.mxu0 0.0
    %361 = vmatpush2.msra.mxu0 0.0
    %362 = vmatprep.subr.mxu0 0.0
    %363 = vmatpush2.msra.mxu0 0.0
    %364 = vmatprep.subr.mxu0 0.0
    %365 = vmatpush2.msra.mxu0 0.0
    %366 = vmatprep.subr.mxu0 0.0
    %367 = vmatpush2.msra.mxu0 0.0
    %368 = vmatprep.subr.mxu0 0.0
    %369 = vmatpush2.msra.mxu0 0.0
    %370 = vmatprep.subr.mxu0 0.0
    %371 = vmatpush2.msra.mxu0 0.0
    %372 = vmatprep.subr.mxu0 0.0
    %373 = vmatpush2.msra.mxu0 0.0
    %374 = vmatprep.subr.mxu0 0.0
    %375 = vmatpush2.msra.mxu0 0.0
    %376 = vmatprep.subr.mxu0 0.0
    %377 = vmatpush2.msra.mxu0 0.0
    %378 = vmatprep.mubr.f32.mxu0 0.0
    %379 = vmatmul.mubr.f32.gmra.mxu0 %v134
    %v380 = vpop.f32.mrf.mxu0
    %v381 = vadd.f32 %v298, %v380
    %v382 = vpop.f32.mrf.mxu0
    %v383 = vadd.f32 %v300, %v382
    %384 = vmatprep.mubr.f32.mxu0 0.0
    %385 = vmatmul.mubr.f32.gmra.mxu0 %v137
    %v386 = vpop.f32.mrf.mxu0
    %v387 = vadd.f32 %v304, %v386
    %v388 = vpop.f32.mrf.mxu0
    %v389 = vadd.f32 %v306, %v388
    %390 = vdwg.mxu0
    %v391 = vadd.f32 %v211, %v213
    %392 = vadd.xlane.f32.xlu0 %v391
    %v393 = vpop.xlane.xlu0 %392
    %v394 = vadd.f32 %v217, %v219
    %395 = vadd.xlane.f32.xlu0 %v394
    %v396 = vpop.xlane.xlu0 %395
    %v397 = vadd.f32 %v381, %v383
    %398 = vadd.xlane.f32.xlu0 %v397
    %v399 = vpop.xlane.xlu0 %398
    %v400 = vadd.f32 %v387, %v389
    %401 = vadd.xlane.f32.xlu0 %v400
    %v402 = vpop.xlane.xlu0 %401
    %v403 = vadd.f32 %v393, %v399
    %v404 = vadd.f32 %v396, %v402
    %v405 = vmul.f32 %v403, 0.001953125
    %v406 = vmul.f32 %v404, 0.001953125
    %v407 = vsub.f32 %v211, %v405
    %v408 = vsub.f32 %v213, %v405
    %v409 = vsub.f32 %v217, %v406
    %v410 = vsub.f32 %v219, %v406
    %v411 = vmul.f32 %v407, %v407
    %v412 = vmul.f32 %v408, %v408
    %v413 = vmul.f32 %v409, %v409
    %v414 = vmul.f32 %v410, %v410
    %v415 = vadd.f32 %v411, %v412
    %416 = vadd.xlane.f32.xlu0 %v415
    %v417 = vpop.xlane.xlu0 %416
    %v418 = vadd.f32 %v413, %v414
    %419 = vadd.xlane.f32.xlu0 %v418
    %v420 = vpop.xlane.xlu0 %419
    %v421 = vsub.f32 %v381, %v405
    %v422 = vsub.f32 %v383, %v405
    %v423 = vsub.f32 %v387, %v406
    %v424 = vsub.f32 %v389, %v406
    %v425 = vmul.f32 %v421, %v421
    %v426 = vmul.f32 %v422, %v422
    %v427 = vmul.f32 %v423, %v423
    %v428 = vmul.f32 %v424, %v424
    %v429 = vadd.f32 %v425, %v426
    %430 = vadd.xlane.f32.xlu0 %v429
    %v431 = vpop.xlane.xlu0 %430
    %v432 = vadd.f32 %v427, %v428
    %433 = vadd.xlane.f32.xlu0 %v432
    %v434 = vpop.xlane.xlu0 %433
    %v435 = vadd.f32 %v417, %v431
    %v436 = vadd.f32 %v420, %v434
    %v437 = vmul.f32 %v435, 0.001953125
    %v438 = vmul.f32 %v436, 0.001953125
    %v439 = vld [vmem:[%s5] sm:$0xff]
    %v440 = vld [vmem:[%s5 + $0x8] sm:$0xff]
    %v441 = vadd.f32 %v437, 1e-05
    %v442 = vadd.f32 %v438, 1e-05
    %v443 = vrsqrt.pop %v441
    %v444 = vrsqrt.pop %v442
    %v445 = vmul.f32 %v439, %v443
    %v446 = vmul.f32 %v440, %v444
    %v447 = vld [vmem:[%s7] sm:$0xff]
    %v448 = vld [vmem:[%s7 + $0x8] sm:$0xff]
    %v449 = vmul.f32 %v405, %v445
    %v450 = vmul.f32 %v406, %v446
    %v451 = vsub.f32 %v447, %v449
    %v452 = vsub.f32 %v448, %v450
    %454 = vset.pattern.permute.xlu0 0
    %455 = vperm.xlu0 %454, %v445
    %v456 = vpop.permute.xlu0 %455
    %459 = vset.pattern.permute.xlu0 0
    %460 = vperm.xlu0 %459, %v446
    %v461 = vpop.permute.xlu0 %460
    %v463 = vmul.f32 %v211, %v456
    %v464 = vmul.f32 %v213, %v456
    %v465 = vmul.f32 %v217, %v461
    %v466 = vmul.f32 %v219, %v461
    %468 = vset.pattern.permute.xlu0 0
    %469 = vperm.xlu0 %468, %v451
    %v470 = vpop.permute.xlu0 %469
    %473 = vset.pattern.permute.xlu0 0
    %474 = vperm.xlu0 %473, %v452
    %v475 = vpop.permute.xlu0 %474
    %v477 = vadd.f32 %v463, %v470
    %v478 = vadd.f32 %v464, %v470
    %v479 = vadd.f32 %v465, %v475
    %v480 = vadd.f32 %v466, %v475
    %v481 = vmax.f32 %v477, 0.0
    %v482 = vmax.f32 %v478, 0.0
    %v483 = vmax.f32 %v479, 0.0
    %v484 = vmax.f32 %v480, 0.0
    %v485 = vmul.f32 %v381, %v456
    %v486 = vmul.f32 %v383, %v456
    %v487 = vmul.f32 %v387, %v461
    %v488 = vmul.f32 %v389, %v461
    %v489 = vadd.f32 %v485, %v470
    %v490 = vadd.f32 %v486, %v470
    %v491 = vadd.f32 %v487, %v475
    %v492 = vadd.f32 %v488, %v475
    %v493 = vmax.f32 %v489, 0.0
    %v494 = vmax.f32 %v490, 0.0
    %v495 = vmax.f32 %v491, 0.0
    %v496 = vmax.f32 %v492, 0.0
    %v497 = vld [vmem:[%s4] sm:$0xff]
    %v498 = vld [vmem:[%s4 + $0x8] sm:$0xff]
    %v499 = vld [vmem:[%s4 + $0x10] sm:$0xff]
    %v500 = vld [vmem:[%s4 + $0x18] sm:$0xff]
    %vm501 = vcmask 130048
    %v503 = vsel %vm501, %v497, 0
    %v506 = vsel %vm501, %v498, 0
    %v509 = vsel %vm501, %v499, 0
    %v512 = vsel %vm501, %v500, 0
    %514 = vmatprep.subr.mxu0 0.0
    %515 = vmatpush1.msra.mxu0 0.0
    %516 = vmatprep.subr.mxu0 0.0
    %517 = vmatpush1.msra.mxu0 0.0
    %518 = vmatprep.subr.mxu0 0.0
    %519 = vmatpush1.msra.mxu0 0.0
    %520 = vmatprep.subr.mxu0 0.0
    %521 = vmatpush1.msra.mxu0 0.0
    %522 = vmatprep.subr.mxu0 0.0
    %523 = vmatpush1.msra.mxu0 0.0
    %524 = vmatprep.subr.mxu0 0.0
    %525 = vmatpush1.msra.mxu0 0.0
    %526 = vmatprep.subr.mxu0 0.0
    %527 = vmatpush1.msra.mxu0 0.0
    %528 = vmatprep.subr.mxu0 0.0
    %529 = vmatpush1.msra.mxu0 0.0
    %530 = vmatprep.subr.mxu0 0.0
    %531 = vmatpush1.msra.mxu0 0.0
    %532 = vmatprep.subr.mxu0 0.0
    %533 = vmatpush1.msra.mxu0 0.0
    %534 = vmatprep.subr.mxu0 0.0
    %535 = vmatpush1.msra.mxu0 0.0
    %536 = vmatprep.subr.mxu0 0.0
    %537 = vmatpush1.msra.mxu0 0.0
    %538 = vmatprep.subr.mxu0 0.0
    %539 = vmatpush1.msra.mxu0 0.0
    %540 = vmatprep.subr.mxu0 0.0
    %541 = vmatpush1.msra.mxu0 0.0
    %542 = vmatprep.subr.mxu0 %v484
    %543 = vmatpush1.msra.mxu0 %v483
    %544 = vmatprep.subr.mxu0 %v482
    %545 = vmatpush1.msra.mxu0 %v481
    %546 = vmatprep.subr.mxu0 0.0
    %547 = vmatpush2.msra.mxu0 0.0
    %548 = vmatprep.subr.mxu0 0.0
    %549 = vmatpush2.msra.mxu0 0.0
    %550 = vmatprep.subr.mxu0 0.0
    %551 = vmatpush2.msra.mxu0 0.0
    %552 = vmatprep.subr.mxu0 0.0
    %553 = vmatpush2.msra.mxu0 0.0
    %554 = vmatprep.subr.mxu0 0.0
    %555 = vmatpush2.msra.mxu0 0.0
    %556 = vmatprep.subr.mxu0 0.0
    %557 = vmatpush2.msra.mxu0 0.0
    %558 = vmatprep.subr.mxu0 0.0
    %559 = vmatpush2.msra.mxu0 0.0
    %560 = vmatprep.subr.mxu0 0.0
    %561 = vmatpush2.msra.mxu0 0.0
    %562 = vmatprep.subr.mxu0 0.0
    %563 = vmatpush2.msra.mxu0 0.0
    %564 = vmatprep.subr.mxu0 0.0
    %565 = vmatpush2.msra.mxu0 0.0
    %566 = vmatprep.subr.mxu0 0.0
    %567 = vmatpush2.msra.mxu0 0.0
    %568 = vmatprep.subr.mxu0 0.0
    %569 = vmatpush2.msra.mxu0 0.0
    %570 = vmatprep.subr.mxu0 0.0
    %571 = vmatpush2.msra.mxu0 0.0
    %572 = vmatprep.subr.mxu0 0.0
    %573 = vmatpush2.msra.mxu0 0.0
    %574 = vmatprep.subr.mxu0 0.0
    %575 = vmatpush2.msra.mxu0 0.0
    %576 = vmatprep.subr.mxu0 0.0
    %577 = vmatpush2.msra.mxu0 0.0
    %578 = vmatprep.mubr.f32.mxu0 0.0
    %579 = vmatmul.mubr.f32.gmra.mxu0 %v503
    %v580 = vpop.f32.mrf.mxu0
    %v581 = vadd.f32 0.0, %v580
    %v582 = vpop.f32.mrf.mxu0
    %v583 = vadd.f32 0.0, %v582
    %584 = vmatprep.mubr.f32.mxu0 0.0
    %585 = vmatmul.mubr.f32.gmra.mxu0 %v506
    %v586 = vpop.f32.mrf.mxu0
    %v587 = vadd.f32 0.0, %v586
    %v588 = vpop.f32.mrf.mxu0
    %v589 = vadd.f32 0.0, %v588
    %590 = vmatprep.mubr.f32.mxu0 0.0
    %591 = vmatmul.mubr.f32.gmra.mxu0 %v509
    %v592 = vpop.f32.mrf.mxu0
    %v593 = vadd.f32 0.0, %v592
    %v594 = vpop.f32.mrf.mxu0
    %v595 = vadd.f32 0.0, %v594
    %596 = vmatprep.mubr.f32.mxu0 0.0
    %597 = vmatmul.mubr.f32.gmra.mxu0 %v512
    %v598 = vpop.f32.mrf.mxu0
    %v599 = vadd.f32 0.0, %v598
    %v600 = vpop.f32.mrf.mxu0
    %v601 = vadd.f32 0.0, %v600
    %602 = vdwg.mxu0
    %603 = vmatprep.subr.mxu0 0.0
    %604 = vmatpush1.msra.mxu0 0.0
    %605 = vmatprep.subr.mxu0 0.0
    %606 = vmatpush1.msra.mxu0 0.0
    %607 = vmatprep.subr.mxu0 0.0
    %608 = vmatpush1.msra.mxu0 0.0
    %609 = vmatprep.subr.mxu0 0.0
    %610 = vmatpush1.msra.mxu0 0.0
    %611 = vmatprep.subr.mxu0 0.0
    %612 = vmatpush1.msra.mxu0 0.0
    %613 = vmatprep.subr.mxu0 0.0
    %614 = vmatpush1.msra.mxu0 0.0
    %615 = vmatprep.subr.mxu0 0.0
    %616 = vmatpush1.msra.mxu0 0.0
    %617 = vmatprep.subr.mxu0 0.0
    %618 = vmatpush1.msra.mxu0 0.0
    %619 = vmatprep.subr.mxu0 0.0
    %620 = vmatpush1.msra.mxu0 0.0
    %621 = vmatprep.subr.mxu0 0.0
    %622 = vmatpush1.msra.mxu0 0.0
    %623 = vmatprep.subr.mxu0 0.0
    %624 = vmatpush1.msra.mxu0 0.0
    %625 = vmatprep.subr.mxu0 0.0
    %626 = vmatpush1.msra.mxu0 0.0
    %627 = vmatprep.subr.mxu0 0.0
    %628 = vmatpush1.msra.mxu0 0.0
    %629 = vmatprep.subr.mxu0 0.0
    %630 = vmatpush1.msra.mxu0 0.0
    %631 = vmatprep.subr.mxu0 %v496
    %632 = vmatpush1.msra.mxu0 %v495
    %633 = vmatprep.subr.mxu0 %v494
    %634 = vmatpush1.msra.mxu0 %v493
    %635 = vmatprep.subr.mxu0 0.0
    %636 = vmatpush2.msra.mxu0 0.0
    %637 = vmatprep.subr.mxu0 0.0
    %638 = vmatpush2.msra.mxu0 0.0
    %639 = vmatprep.subr.mxu0 0.0
    %640 = vmatpush2.msra.mxu0 0.0
    %641 = vmatprep.subr.mxu0 0.0
    %642 = vmatpush2.msra.mxu0 0.0
    %643 = vmatprep.subr.mxu0 0.0
    %644 = vmatpush2.msra.mxu0 0.0
    %645 = vmatprep.subr.mxu0 0.0
    %646 = vmatpush2.msra.mxu0 0.0
    %647 = vmatprep.subr.mxu0 0.0
    %648 = vmatpush2.msra.mxu0 0.0
    %649 = vmatprep.subr.mxu0 0.0
    %650 = vmatpush2.msra.mxu0 0.0
    %651 = vmatprep.subr.mxu0 0.0
    %652 = vmatpush2.msra.mxu0 0.0
    %653 = vmatprep.subr.mxu0 0.0
    %654 = vmatpush2.msra.mxu0 0.0
    %655 = vmatprep.subr.mxu0 0.0
    %656 = vmatpush2.msra.mxu0 0.0
    %657 = vmatprep.subr.mxu0 0.0
    %658 = vmatpush2.msra.mxu0 0.0
    %659 = vmatprep.subr.mxu0 0.0
    %660 = vmatpush2.msra.mxu0 0.0
    %661 = vmatprep.subr.mxu0 0.0
    %662 = vmatpush2.msra.mxu0 0.0
    %663 = vmatprep.subr.mxu0 0.0
    %664 = vmatpush2.msra.mxu0 0.0
    %665 = vmatprep.subr.mxu0 0.0
    %666 = vmatpush2.msra.mxu0 0.0
    %667 = vmatprep.mubr.f32.mxu0 0.0
    %668 = vmatmul.mubr.f32.gmra.mxu0 %v503
    %v669 = vpop.f32.mrf.mxu0
    %v670 = vadd.f32 0.0, %v669
    %v671 = vpop.f32.mrf.mxu0
    %v672 = vadd.f32 0.0, %v671
    %673 = vmatprep.mubr.f32.mxu0 0.0
    %674 = vmatmul.mubr.f32.gmra.mxu0 %v506
    %v675 = vpop.f32.mrf.mxu0
    %v676 = vadd.f32 0.0, %v675
    %v677 = vpop.f32.mrf.mxu0
    %v678 = vadd.f32 0.0, %v677
    %679 = vmatprep.mubr.f32.mxu0 0.0
    %680 = vmatmul.mubr.f32.gmra.mxu0 %v509
    %v681 = vpop.f32.mrf.mxu0
    %v682 = vadd.f32 0.0, %v681
    %v683 = vpop.f32.mrf.mxu0
    %v684 = vadd.f32 0.0, %v683
    %685 = vmatprep.mubr.f32.mxu0 0.0
    %686 = vmatmul.mubr.f32.gmra.mxu0 %v512
    %v687 = vpop.f32.mrf.mxu0
    %v688 = vadd.f32 0.0, %v687
    %v689 = vpop.f32.mrf.mxu0
    %v690 = vadd.f32 0.0, %v689
    %691 = vdwg.mxu0
    %v692 = vadd.f32 %v581, %v583
    %693 = vadd.xlane.f32.xlu0 %v692
    %v694 = vpop.xlane.xlu0 %693
    %v695 = vadd.f32 %v587, %v589
    %696 = vadd.xlane.f32.xlu0 %v695
    %v697 = vpop.xlane.xlu0 %696
    %v698 = vadd.f32 %v593, %v595
    %699 = vadd.xlane.f32.xlu0 %v698
    %v700 = vpop.xlane.xlu0 %699
    %v701 = vadd.f32 %v599, %v601
    %702 = vadd.xlane.f32.xlu0 %v701
    %v703 = vpop.xlane.xlu0 %702
    %v704 = vadd.f32 %v670, %v672
    %705 = vadd.xlane.f32.xlu0 %v704
    %v706 = vpop.xlane.xlu0 %705
    %v707 = vadd.f32 %v676, %v678
    %708 = vadd.xlane.f32.xlu0 %v707
    %v709 = vpop.xlane.xlu0 %708
    %v710 = vadd.f32 %v682, %v684
    %711 = vadd.xlane.f32.xlu0 %v710
    %v712 = vpop.xlane.xlu0 %711
    %v713 = vadd.f32 %v688, %v690
    %714 = vadd.xlane.f32.xlu0 %v713
    %v715 = vpop.xlane.xlu0 %714
    %v716 = vadd.f32 %v694, %v706
    %v717 = vadd.f32 %v697, %v709
    %v718 = vadd.f32 %v700, %v712
    %v719 = vadd.f32 %v703, %v715
    %v720 = vmul.f32 %v716, 0.001953125
    %v721 = vmul.f32 %v717, 0.001953125
    %v722 = vmul.f32 %v718, 0.001953125
    %v723 = vmul.f32 %v719, 0.001953125
    %v724 = vsub.f32 %v581, %v720
    %v725 = vsub.f32 %v583, %v720
    %v726 = vsub.f32 %v587, %v721
    %v727 = vsub.f32 %v589, %v721
    %v728 = vsub.f32 %v593, %v722
    %v729 = vsub.f32 %v595, %v722
    %v730 = vsub.f32 %v599, %v723
    %v731 = vsub.f32 %v601, %v723
    %v732 = vmul.f32 %v724, %v724
    %v733 = vmul.f32 %v725, %v725
    %v734 = vmul.f32 %v726, %v726
    %v735 = vmul.f32 %v727, %v727
    %v736 = vmul.f32 %v728, %v728
    %v737 = vmul.f32 %v729, %v729
    %v738 = vmul.f32 %v730, %v730
    %v739 = vmul.f32 %v731, %v731
    %v740 = vadd.f32 %v732, %v733
    %741 = vadd.xlane.f32.xlu0 %v740
    %v742 = vpop.xlane.xlu0 %741
    %v743 = vadd.f32 %v734, %v735
    %744 = vadd.xlane.f32.xlu0 %v743
    %v745 = vpop.xlane.xlu0 %744
    %v746 = vadd.f32 %v736, %v737
    %747 = vadd.xlane.f32.xlu0 %v746
    %v748 = vpop.xlane.xlu0 %747
    %v749 = vadd.f32 %v738, %v739
    %750 = vadd.xlane.f32.xlu0 %v749
    %v751 = vpop.xlane.xlu0 %750
    %v752 = vsub.f32 %v670, %v720
    %v753 = vsub.f32 %v672, %v720
    %v754 = vsub.f32 %v676, %v721
    %v755 = vsub.f32 %v678, %v721
    %v756 = vsub.f32 %v682, %v722
    %v757 = vsub.f32 %v684, %v722
    %v758 = vsub.f32 %v688, %v723
    %v759 = vsub.f32 %v690, %v723
    %v760 = vmul.f32 %v752, %v752
    %v761 = vmul.f32 %v753, %v753
    %v762 = vmul.f32 %v754, %v754
    %v763 = vmul.f32 %v755, %v755
    %v764 = vmul.f32 %v756, %v756
    %v765 = vmul.f32 %v757, %v757
    %v766 = vmul.f32 %v758, %v758
    %v767 = vmul.f32 %v759, %v759
    %v768 = vadd.f32 %v760, %v761
    %769 = vadd.xlane.f32.xlu0 %v768
    %v770 = vpop.xlane.xlu0 %769
    %v771 = vadd.f32 %v762, %v763
    %772 = vadd.xlane.f32.xlu0 %v771
    %v773 = vpop.xlane.xlu0 %772
    %v774 = vadd.f32 %v764, %v765
    %775 = vadd.xlane.f32.xlu0 %v774
    %v776 = vpop.xlane.xlu0 %775
    %v777 = vadd.f32 %v766, %v767
    %778 = vadd.xlane.f32.xlu0 %v777
    %v779 = vpop.xlane.xlu0 %778
    %v780 = vadd.f32 %v742, %v770
    %v781 = vadd.f32 %v745, %v773
    %v782 = vadd.f32 %v748, %v776
    %v783 = vadd.f32 %v751, %v779
    %v784 = vmul.f32 %v780, 0.001953125
    %v785 = vmul.f32 %v781, 0.001953125
    %v786 = vmul.f32 %v782, 0.001953125
    %v787 = vmul.f32 %v783, 0.001953125
    %v788 = vld [vmem:[%s6] sm:$0xff]
    %v789 = vld [vmem:[%s6 + $0x8] sm:$0xff]
    %v790 = vld [vmem:[%s6 + $0x10] sm:$0xff]
    %v791 = vld [vmem:[%s6 + $0x18] sm:$0xff]
    %v792 = vadd.f32 %v784, 1e-05
    %v793 = vadd.f32 %v785, 1e-05
    %v794 = vadd.f32 %v786, 1e-05
    %v795 = vadd.f32 %v787, 1e-05
    %v796 = vrsqrt.pop %v792
    %v797 = vrsqrt.pop %v793
    %v798 = vrsqrt.pop %v794
    %v799 = vrsqrt.pop %v795
    %v800 = vmul.f32 %v788, %v796
    %v801 = vmul.f32 %v789, %v797
    %v802 = vmul.f32 %v790, %v798
    %v803 = vmul.f32 %v791, %v799
    %v804 = vld [vmem:[%s8] sm:$0xff]
    %v805 = vld [vmem:[%s8 + $0x8] sm:$0xff]
    %v806 = vld [vmem:[%s8 + $0x10] sm:$0xff]
    %v807 = vld [vmem:[%s8 + $0x18] sm:$0xff]
    %v808 = vmul.f32 %v720, %v800
    %v809 = vmul.f32 %v721, %v801
    %v810 = vmul.f32 %v722, %v802
    %v811 = vmul.f32 %v723, %v803
    %v812 = vsub.f32 %v804, %v808
    %v813 = vsub.f32 %v805, %v809
    %v814 = vsub.f32 %v806, %v810
    %v815 = vsub.f32 %v807, %v811
    %817 = vset.pattern.permute.xlu0 0
    %818 = vperm.xlu0 %817, %v800
    %v819 = vpop.permute.xlu0 %818
    %822 = vset.pattern.permute.xlu0 0
    %823 = vperm.xlu0 %822, %v801
    %v824 = vpop.permute.xlu0 %823
    %827 = vset.pattern.permute.xlu0 0
    %828 = vperm.xlu0 %827, %v802
    %v829 = vpop.permute.xlu0 %828
    %832 = vset.pattern.permute.xlu0 0
    %833 = vperm.xlu0 %832, %v803
    %v834 = vpop.permute.xlu0 %833
    %v836 = vmul.f32 %v581, %v819
    %v837 = vmul.f32 %v583, %v819
    %v838 = vmul.f32 %v587, %v824
    %v839 = vmul.f32 %v589, %v824
    %v840 = vmul.f32 %v593, %v829
    %v841 = vmul.f32 %v595, %v829
    %v842 = vmul.f32 %v599, %v834
    %v843 = vmul.f32 %v601, %v834
    %845 = vset.pattern.permute.xlu0 0
    %846 = vperm.xlu0 %845, %v812
    %v847 = vpop.permute.xlu0 %846
    %850 = vset.pattern.permute.xlu0 0
    %851 = vperm.xlu0 %850, %v813
    %v852 = vpop.permute.xlu0 %851
    %855 = vset.pattern.permute.xlu0 0
    %856 = vperm.xlu0 %855, %v814
    %v857 = vpop.permute.xlu0 %856
    %860 = vset.pattern.permute.xlu0 0
    %861 = vperm.xlu0 %860, %v815
    %v862 = vpop.permute.xlu0 %861
    %v864 = vadd.f32 %v836, %v847
    %v865 = vadd.f32 %v837, %v847
    %v866 = vadd.f32 %v838, %v852
    %v867 = vadd.f32 %v839, %v852
    %v868 = vadd.f32 %v840, %v857
    %v869 = vadd.f32 %v841, %v857
    %v870 = vadd.f32 %v842, %v862
    %v871 = vadd.f32 %v843, %v862
    %v872 = vmax.f32 %v864, 0.0
    %v873 = vmax.f32 %v865, 0.0
    %v874 = vmax.f32 %v866, 0.0
    %v875 = vmax.f32 %v867, 0.0
    %v876 = vmax.f32 %v868, 0.0
    %v877 = vmax.f32 %v869, 0.0
    %v878 = vmax.f32 %v870, 0.0
    %v879 = vmax.f32 %v871, 0.0
    %v880 = vmul.f32 %v670, %v819
    %v881 = vmul.f32 %v672, %v819
    %v882 = vmul.f32 %v676, %v824
    %v883 = vmul.f32 %v678, %v824
    %v884 = vmul.f32 %v682, %v829
    %v885 = vmul.f32 %v684, %v829
    %v886 = vmul.f32 %v688, %v834
    %v887 = vmul.f32 %v690, %v834
    %v888 = vadd.f32 %v880, %v847
    %v889 = vadd.f32 %v881, %v847
    %v890 = vadd.f32 %v882, %v852
    %v891 = vadd.f32 %v883, %v852
    %v892 = vadd.f32 %v884, %v857
    %v893 = vadd.f32 %v885, %v857
    %v894 = vadd.f32 %v886, %v862
    %v895 = vadd.f32 %v887, %v862
    %v896 = vmax.f32 %v888, 0.0
    %v897 = vmax.f32 %v889, 0.0
    %v898 = vmax.f32 %v890, 0.0
    %v899 = vmax.f32 %v891, 0.0
    %v900 = vmax.f32 %v892, 0.0
    %v901 = vmax.f32 %v893, 0.0
    %v902 = vmax.f32 %v894, 0.0
    %v903 = vmax.f32 %v895, 0.0
    %904 = vst [vmem:[#allocation2] sm:$0xff] %v872
    %905 = vst [vmem:[#allocation2 + $0x8] sm:$0xff] %v873
    %906 = vst [vmem:[#allocation2 + $0x10] sm:$0xff] %v874
    %907 = vst [vmem:[#allocation2 + $0x18] sm:$0xff] %v875
    %908 = vst [vmem:[#allocation2 + $0x20] sm:$0xff] %v876
    %909 = vst [vmem:[#allocation2 + $0x28] sm:$0xff] %v877
    %910 = vst [vmem:[#allocation2 + $0x30] sm:$0xff] %v878
    %911 = vst [vmem:[#allocation2 + $0x38] sm:$0xff] %v879
    %s912 = scalar_lea.vmem [#allocation2], 64
    %913 = vst [vmem:[%s912] sm:$0xff] %v896
    %914 = vst [vmem:[%s912 + $0x8] sm:$0xff] %v897
    %915 = vst [vmem:[%s912 + $0x10] sm:$0xff] %v898
    %916 = vst [vmem:[%s912 + $0x18] sm:$0xff] %v899
    %917 = vst [vmem:[%s912 + $0x20] sm:$0xff] %v900
    %918 = vst [vmem:[%s912 + $0x28] sm:$0xff] %v901
    %919 = vst [vmem:[%s912 + $0x30] sm:$0xff] %v902
    %920 = vst [vmem:[%s912 + $0x38] sm:$0xff] %v903
    // Predicated region
    $region38: #{tpu_custom_call.1} parent=1 // pred_check
      _
    $region39: #{tpu_custom_call.1} parent=1 // pred_check_branch
      %922 = sbr.rel (0) target = $region41
    $region40: #{tpu_custom_call.1} parent=1 // pred_region
      %s924 = ssub.s32 2048, 2048
      %925 = vsyncadd [#allocation3], %s924
      %s926 = sshll.u32 [#allocation2], 4
      %s927 = int_to_ptr.vmem [resolvable:$true] %s926
      %932 = dma.vmem_to_hbm [thread:$0]  %s927, 2048, %s9, [#allocation3], 256, 256, 16
    $region41: #{tpu_custom_call.1} parent=1 // pred_fallthru
      _
    // Predicated region
    $region42: #{tpu_custom_call.1} parent=1 // pred_check
      _
    $region43: #{tpu_custom_call.1} parent=1 // pred_check_branch
      %934 = sbr.rel (0) target = $region45
    $region44: #{tpu_custom_call.1} parent=1 // pred_region
      %935 = dma.done [#allocation3], 2048
    $region45: #{tpu_custom_call.1} parent=1 // pred_fallthru
      _
    %936 = vsyncpa [#allocation3], 1

</llo_original>
